<compile_context>
chip_gen: v5e
topology: v5e:2x2
jax: 0.10.0
libtpu: 0.0.40
codegen_flags: <defaults>
</compile_context>

<pallas_src>
from functools import partial

import jax
import jax.numpy as jnp
from jax.experimental import pallas as pl
from jax.experimental.pallas import tpu as pltpu


def _log_sigmoid(z):
    # Stable log(sigmoid(z)) = min(z, 0) - log(1 + exp(-|z|)); exp arg <= 0 so
    # no overflow and no log(0) for strongly negative scores.
    return jnp.minimum(z, 0.0) - jnp.log(1.0 + jnp.exp(-jnp.abs(z)))


def _nsl_kernel(x_ref, o_ref, n_ref, loss_ref, acc_ref, *, batch_size):
    i = pl.program_id(0)

    @pl.when(i == 0)
    def _init():
        acc_ref[...] = jnp.zeros_like(acc_ref)

    x = x_ref[...].astype(jnp.float32)      # (BT, Ep)
    o = o_ref[...].astype(jnp.float32)      # (BT, Ep)
    nz = n_ref[...].astype(jnp.float32)     # (BT, N, Ep)
    b_tile = x.shape[0]

    # Positive path: log(sigmoid(<output, input>))                 -> (BT, 1)
    pos_score = jnp.sum(o * x, axis=1, keepdims=True)
    pos_logsig = _log_sigmoid(pos_score)

    # Negative path: single VPU pass over the big (BT, N, Ep) tile; the
    # negation lives only on the tiny (BT, N) score tensor.
    neg_score = jnp.sum(nz * x[:, None, :], axis=2)                 # (BT, N)
    neg_logsig = jnp.sum(_log_sigmoid(-neg_score), axis=1, keepdims=True)

    # Mask rows that are batch padding (B not a multiple of the tile size).
    row = i * b_tile + jax.lax.broadcasted_iota(jnp.int32, (b_tile, 1), 0)
    valid = (row < batch_size).astype(jnp.float32)

    acc_ref[...] += jnp.sum(valid * (pos_logsig + neg_logsig), keepdims=True)

    @pl.when(i == pl.num_programs(0) - 1)
    def _finalize():
        # Mean over the GLOBAL batch, not the per-tile block size.
        loss_ref[...] = -acc_ref[...] / float(batch_size)


def negative_sampling_loss(input_vectors, output_vectors, noise_vectors,
                           *, b_tile=None,
                           vmem_tile_budget_bytes=16 * 1024 * 1024):
    """Pallas implementation of NegativeSamplingLoss.forward; returns scalar f32."""
    B, E = input_vectors.shape
    Bn, N, En = noise_vectors.shape
    assert Bn == B and En == E and output_vectors.shape == (B, E)

    # Lane-dense layout: pad the embedding (last) dim to a multiple of 128.
    # Zero padding does not change any dot product.
    E_pad = max(128, ((E + 127) // 128) * 128)

    # Pick the batch tile from a double-buffered VMEM budget (noise dominates).
    if b_tile is None:
        bytes_per_row = (N + 2) * E_pad * 4                 # f32: noise + in + out
        rows = vmem_tile_budget_bytes // (2 * bytes_per_row)
        b_tile = int(max(8, min(512, (rows // 8) * 8)))
    b_tile = max(8, ((int(b_tile) + 7) // 8) * 8)
    b_tile = min(b_tile, ((B + 7) // 8) * 8)                # no tiles larger than B

    B_pad = ((B + b_tile - 1) // b_tile) * b_tile
    grid = (B_pad // b_tile,)

    def _pad(a, target_shape):
        if a.shape == tuple(target_shape):
            return a
        cfg = [(0, t - s) for s, t in zip(a.shape, target_shape)]
        return jnp.pad(a, cfg)

    x = _pad(input_vectors, (B_pad, E_pad))
    o = _pad(output_vectors, (B_pad, E_pad))
    nz = _pad(noise_vectors, (B_pad, N, E_pad))

    out = pl.pallas_call(
        partial(_nsl_kernel, batch_size=B),
        out_shape=jax.ShapeDtypeStruct((1, 1), jnp.float32),
        grid_spec=pltpu.PrefetchScalarGridSpec(
            num_scalar_prefetch=0,
            grid=grid,
            in_specs=[
                pl.BlockSpec((b_tile, E_pad), lambda i: (i, 0)),
                pl.BlockSpec((b_tile, E_pad), lambda i: (i, 0)),
                pl.BlockSpec((b_tile, N, E_pad), lambda i: (i, 0, 0)),
            ],
            out_specs=pl.BlockSpec((1, 1), lambda i: (0, 0)),
            scratch_shapes=[pltpu.VMEM((1, 1), jnp.float32)],
        ),
        compiler_params=pltpu.CompilerParams(
            dimension_semantics=("arbitrary",),     # reduction / accumulator axis
            vmem_limit_bytes=48 * 1024 * 1024,      # safe on v5e/v6e/v7x
        ),
    )(x, o, nz)
    return out[0, 0]


def _reference(input_vectors, output_vectors, noise_vectors):
    # Pure-JAX transcription of the PyTorch forward for validation.
    out_score = jnp.einsum('be,be->b', output_vectors, input_vectors)
    out_loss = jnp.log(jax.nn.sigmoid(out_score))
    noise_score = jnp.einsum('bne,be->bn', -noise_vectors, input_vectors)
    noise_loss = jnp.log(jax.nn.sigmoid(noise_score)).sum(axis=1)
    return -(out_loss + noise_loss).mean()


if __name__ == "__main__":
    # Small shapes; B not a multiple of the tile and E not a multiple of 128 so
    # the masking / padding paths are exercised.
    B, E, N = 12, 100, 5

    key = jax.random.PRNGKey(0)
    k1, k2, k3 = jax.random.split(key, 3)
    input_vectors = 0.5 * jax.random.normal(k1, (B, E), dtype=jnp.float32)
    output_vectors = 0.5 * jax.random.normal(k2, (B, E), dtype=jnp.float32)
    noise_vectors = 0.5 * jax.random.normal(k3, (B, N, E), dtype=jnp.float32)

    # Force b_tile=8 so the grid has 2 steps (cross-tile accumulation + ragged
    # last tile are both exercised).
    loss = negative_sampling_loss(input_vectors, output_vectors, noise_vectors,
                                  b_tile=8)
    loss = jax.block_until_ready(loss)

    ref = _reference(input_vectors, output_vectors, noise_vectors)
    assert jnp.allclose(loss, ref, atol=1e-4, rtol=1e-4), (loss, ref)

    print("KERNEL_OK")
</pallas_src>

<mosaic_0001>
module attributes {stable_mosaic.version = 11 : i64} {
  func.func @_nsl_kernel(%arg0: i32, %arg1: memref<8x128xf32, #tpu.memory_space<vmem>>, %arg2: memref<8x128xf32, #tpu.memory_space<vmem>>, %arg3: memref<8x5x128xf32, #tpu.memory_space<vmem>>, %arg4: memref<1x1xf32, #tpu.memory_space<vmem>>, %arg5: memref<1x1xf32, #tpu.memory_space<vmem>>) attributes {dimension_semantics = [#tpu.dimension_semantics<arbitrary>], iteration_bounds = array<i64: 2>, scalar_prefetch = 0 : i64, scratch_operands = 1 : i64, tpu.core_type = #tpu.core_type<tc>, window_params = [{transform_indices = @transform_0, window_bounds = array<i64: 8, 128>}, {transform_indices = @transform_1, window_bounds = array<i64: 8, 128>}, {transform_indices = @transform_2, window_bounds = array<i64: 8, 5, 128>}, {pipeline_mode = #tpu.pipeline_mode<synchronous>, transform_indices = @transform_3, window_bounds = array<i64: 1, 1>}]} {
    %c0_i32 = arith.constant 0 : i32
    %0 = arith.cmpi eq, %arg0, %c0_i32 : i32
    %1 = arith.extui %0 : i1 to i32
    %c0_i32_0 = arith.constant 0 : i32
    %2 = arith.cmpi ne, %1, %c0_i32_0 : i32
    scf.if %2 {
      %cst_22 = arith.constant 0.000000e+00 : f32
      %58 = vector.broadcast %cst_22 : f32 to vector<1x1xf32>
      %c0_23 = arith.constant 0 : index
      %c0_24 = arith.constant 0 : index
      %59 = vector.load %arg5[%c0_23, %c0_24] : memref<1x1xf32, #tpu.memory_space<vmem>>, vector<1x1xf32>
      tpu.vector_store %arg5[%c0_23, %c0_24], %58 {strides = array<i32>} : memref<1x1xf32, #tpu.memory_space<vmem>>, vector<1x1xf32>,
    } else {
    }
    %c0 = arith.constant 0 : index
    %c0_1 = arith.constant 0 : index
    %3 = vector.load %arg1[%c0, %c0_1] : memref<8x128xf32, #tpu.memory_space<vmem>>, vector<8x128xf32>
    %c0_2 = arith.constant 0 : index
    %c0_3 = arith.constant 0 : index
    %4 = vector.load %arg2[%c0_2, %c0_3] : memref<8x128xf32, #tpu.memory_space<vmem>>, vector<8x128xf32>
    %c0_4 = arith.constant 0 : index
    %c0_5 = arith.constant 0 : index
    %c0_6 = arith.constant 0 : index
    %5 = vector.load %arg3[%c0_4, %c0_5, %c0_6] : memref<8x5x128xf32, #tpu.memory_space<vmem>>, vector<8x5x128xf32>
    %6 = arith.mulf %4, %3 : vector<8x128xf32>
    %cst = arith.constant dense<0.000000e+00> : vector<8xf32>
    %7 = vector.multi_reduction <add>, %6, %cst [1] : vector<8x128xf32> to vector<8xf32>
    %8 = vector.shape_cast %7 : vector<8xf32> to vector<8x1xf32>
    %cst_7 = arith.constant 0.000000e+00 : f32
    %9 = vector.broadcast %cst_7 : f32 to vector<8x1xf32>
    %10 = arith.minimumf %8, %9 : vector<8x1xf32>
    %11 = math.absf %8 : vector<8x1xf32>
    %cst_8 = arith.constant 0.000000e+00 : f32
    %12 = vector.broadcast %cst_8 : f32 to vector<8x1xf32>
    %13 = arith.subf %12, %11 : vector<8x1xf32>
    %14 = math.exp %13 : vector<8x1xf32>
    %cst_9 = arith.constant 1.000000e+00 : f32
    %15 = vector.broadcast %cst_9 : f32 to vector<8x1xf32>
    %16 = arith.addf %15, %14 : vector<8x1xf32>
    %17 = math.log %16 : vector<8x1xf32>
    %18 = arith.subf %10, %17 : vector<8x1xf32>
    %19 = vector.shape_cast %3 : vector<8x128xf32> to vector<8x1x128xf32>
    %20 = vector.broadcast %19 : vector<8x1x128xf32> to vector<8x5x128xf32>
    %21 = arith.mulf %5, %20 : vector<8x5x128xf32>
    %cst_10 = arith.constant dense<0.000000e+00> : vector<8x5xf32>
    %22 = vector.multi_reduction <add>, %21, %cst_10 [2] : vector<8x5x128xf32> to vector<8x5xf32>
    %cst_11 = arith.constant 0.000000e+00 : f32
    %23 = vector.broadcast %cst_11 : f32 to vector<8x5xf32>
    %24 = arith.subf %23, %22 : vector<8x5xf32>
    %cst_12 = arith.constant 0.000000e+00 : f32
    %25 = vector.broadcast %cst_12 : f32 to vector<8x5xf32>
    %26 = arith.minimumf %24, %25 : vector<8x5xf32>
    %27 = math.absf %24 : vector<8x5xf32>
    %cst_13 = arith.constant 0.000000e+00 : f32
    %28 = vector.broadcast %cst_13 : f32 to vector<8x5xf32>
    %29 = arith.subf %28, %27 : vector<8x5xf32>
    %30 = math.exp %29 : vector<8x5xf32>
    %cst_14 = arith.constant 1.000000e+00 : f32
    %31 = vector.broadcast %cst_14 : f32 to vector<8x5xf32>
    %32 = arith.addf %31, %30 : vector<8x5xf32>
    %33 = math.log %32 : vector<8x5xf32>
    %34 = arith.subf %26, %33 : vector<8x5xf32>
    %cst_15 = arith.constant dense<0.000000e+00> : vector<8xf32>
    %35 = vector.multi_reduction <add>, %34, %cst_15 [1] : vector<8x5xf32> to vector<8xf32>
    %36 = vector.shape_cast %35 : vector<8xf32> to vector<8x1xf32>
    %c8_i32 = arith.constant 8 : i32
    %37 = arith.muli %arg0, %c8_i32 : i32
    %38 = tpu.iota {dimensions = array<i32: 0>} : vector<8x1xi32>
    %39 = vector.broadcast %37 : i32 to vector<8x1xi32>
    %40 = arith.addi %39, %38 : vector<8x1xi32>
    %c12_i32 = arith.constant 12 : i32
    %41 = vector.broadcast %c12_i32 : i32 to vector<8x1xi32>
    %42 = arith.cmpi slt, %40, %41 : vector<8x1xi32>
    %43 = arith.extui %42 : vector<8x1xi1> to vector<8x1xi32>
    %44 = arith.sitofp %43 : vector<8x1xi32> to vector<8x1xf32>
    %c0_16 = arith.constant 0 : index
    %c0_17 = arith.constant 0 : index
    %45 = vector.load %arg5[%c0_16, %c0_17] : memref<1x1xf32, #tpu.memory_space<vmem>>, vector<1x1xf32>
    %46 = arith.addf %18, %36 : vector<8x1xf32>
    %47 = arith.mulf %44, %46 : vector<8x1xf32>
    %48 = vector.shape_cast %47 : vector<8x1xf32> to vector<1x8x1xf32>
    %cst_18 = arith.constant dense<0.000000e+00> : vector<1xf32>
    %49 = vector.multi_reduction <add>, %48, %cst_18 [1, 2] : vector<1x8x1xf32> to vector<1xf32>
    %50 = vector.shape_cast %49 : vector<1xf32> to vector<1x1x1xf32>
    %51 = vector.extract %50[0, 0, 0] : f32 from vector<1x1x1xf32>
    %52 = vector.broadcast %51 : f32 to vector<1x1xf32>
    %53 = arith.addf %45, %52 : vector<1x1xf32>
    %c0_19 = arith.constant 0 : index
    %c0_20 = arith.constant 0 : index
    %54 = vector.load %arg5[%c0_19, %c0_20] : memref<1x1xf32, #tpu.memory_space<vmem>>, vector<1x1xf32>
    tpu.vector_store %arg5[%c0_19, %c0_20], %53 {strides = array<i32>} : memref<1x1xf32, #tpu.memory_space<vmem>>, vector<1x1xf32>,
    %c1_i32 = arith.constant 1 : i32
    %55 = arith.cmpi eq, %arg0, %c1_i32 : i32
    %56 = arith.extui %55 : i1 to i32
    %c0_i32_21 = arith.constant 0 : i32
    %57 = arith.cmpi ne, %56, %c0_i32_21 : i32
    scf.if %57 {
      %c0_22 = arith.constant 0 : index
      %c0_23 = arith.constant 0 : index
      %58 = vector.load %arg5[%c0_22, %c0_23] : memref<1x1xf32, #tpu.memory_space<vmem>>, vector<1x1xf32>
      %cst_24 = arith.constant 0.000000e+00 : f32
      %59 = vector.broadcast %cst_24 : f32 to vector<1x1xf32>
      %60 = arith.subf %59, %58 : vector<1x1xf32>
      %cst_25 = arith.constant 1.200000e+01 : f32
      %61 = vector.broadcast %cst_25 : f32 to vector<1x1xf32>
      %62 = arith.divf %60, %61 : vector<1x1xf32>
      %c0_26 = arith.constant 0 : index
      %c0_27 = arith.constant 0 : index
      %63 = vector.load %arg4[%c0_26, %c0_27] : memref<1x1xf32, #tpu.memory_space<vmem>>, vector<1x1xf32>
      tpu.vector_store %arg4[%c0_26, %c0_27], %62 {strides = array<i32>} : memref<1x1xf32, #tpu.memory_space<vmem>>, vector<1x1xf32>,
    } else {
    }
    return
  }
  func.func @transform_0(%arg0: i32) -> (i32, i32) {
    %c0_i32 = arith.constant 0 : i32
    %c0_i32_0 = arith.constant 0 : i32
    return %arg0, %c0_i32 : i32, i32
  }
  func.func @transform_1(%arg0: i32) -> (i32, i32) {
    %c0_i32 = arith.constant 0 : i32
    %c0_i32_0 = arith.constant 0 : i32
    return %arg0, %c0_i32 : i32, i32
  }
  func.func @transform_2(%arg0: i32) -> (i32, i32, i32) {
    %c0_i32 = arith.constant 0 : i32
    %c0_i32_0 = arith.constant 0 : i32
    %c0_i32_1 = arith.constant 0 : i32
    return %arg0, %c0_i32, %c0_i32_0 : i32, i32, i32
  }
  func.func @transform_3(%arg0: i32) -> (i32, i32) {
    %c0_i32 = arith.constant 0 : i32
    %c0_i32_0 = arith.constant 0 : i32
    %c0_i32_1 = arith.constant 0 : i32
    return %c0_i32, %c0_i32_0 : i32, i32
  }
}

</mosaic_0001>

<llo_original>
// kernel: tpu_custom_call.1
$region0: #{tpu_custom_call.1}
  #allocation0 [shape = 'u32[]', space=smem, size = 0x4, offset = 0x4, fixed_abs, tag = 'smem constant byte address 0x4 - core index']
  #allocation1 [shape = 'u32[72,128]{1,0:T(1,128)}', space=vmem, size = 0x9000, scoped, tag = 'internal scratch']
  #allocation2 [shape = 'f32[1,1]{1,0:T(1,128)}', space=vmem, size = 0x200, scoped, tag = 'scratch operand']
  %s0 = inlined_call_operand.vmem [shape: f32[16,128], index: 0, kind: input, shape index: {}]
  %s1 = inlined_call_operand.vmem [shape: f32[16,128], index: 1, kind: input, shape index: {}]
  %s2 = inlined_call_operand.vmem [shape: f32[16,5,128], index: 2, kind: input, shape index: {}]
  %s3 = inlined_call_operand.hbm [shape: f32[1,1], index: 3, kind: output, shape index: {}]
  %s4 = sld [smem:[#allocation0]]
  $region53: #{tpu_custom_call.1} parent=0
    _
  %s6 = ssub.s32 1, %s4
  %s7 = scalar_select 0, %s6, %s4
  $region1: #{tpu_custom_call.1} parent=0
    #allocation3 [shape = 'u8[512]{0}', space=vmem, size = 0x400, scoped, tag = 'output window, operand 0, single buffered']
    #allocation4 [shape = 's32[2]{0}', space=sflag, size = 0x8, scoped, tag = 'scoped memory for tpu_custom_call.1']
    %8 = vsyncpa [#allocation4], 0
    loop: start=0, step=1, limit=4
    $region2: #{tpu_custom_call.1} parent=1 // loop_pre_header
      _
    $region3: #{tpu_custom_call.1} parent=1 // loop_header
      %s10 = sphi 0, %s14
      %p11 = scmp.ge.s32.totalorder %s10, 4
      %s20 = sphi 0, %s22
      %s23 = sphi 0, %s20
      %s24 = sphi 0, %s23
      %s40 = sphi 0, %s24
      %s46 = sphi 0, %s48
      %s49 = sphi 0, %s46
      %s50 = sphi 0, %s49
      %s66 = sphi 0, %s50
      %s72 = sphi 0, %s74
      %s75 = sphi 0, %s72
      %s76 = sphi 0, %s75
      %s92 = sphi 0, %s76
      %s96 = sphi 0, %s96
      %s98 = sphi 0, %s96
      %s99 = sphi 0, %s98
      %s113 = sphi 0, %s99
    $region4: #{tpu_custom_call.1} parent=1 // loop_header_branch
      %13 = sbr.rel (%p11) target = $region8
    $region5: #{tpu_custom_call.1} parent=1 // loop_body
      %s15 = ssub.s32 %s10, 1
      %s16 = ssub.s32 %s10, 2
      %s17 = sadd.s32 %s10, 1
      %s18 = ssub.s32 %s10, %s17
      %p19 = scmp.eq.s32.totalorder %s18, 0
      %s21 = sadd.s32 %s20, 1
      %s22 = scalar_select %p19, %s20, %s21
      %p25 = pneg %p19
      %p26 = scmp.eq.s32.totalorder %s10, 1
      %p27 = por %p25, %p26
      %p28 = scmp.ne.s32.totalorder %s20, %s23
      %p29 = scmp.eq.s32.totalorder %s10, 0
      %p30 = por %p28, %p29
      %p31 = scmp.ne.s32.totalorder %s20, %s23
      %p32 = scmp.eq.s32.totalorder %s15, 1
      %p33 = por %p31, %p32
      %p34 = scmp.ne.s32.totalorder %s23, %s24
      %p35 = scmp.eq.s32.totalorder %s15, 0
      %p36 = por %p34, %p35
      %p37 = scmp.ne.s32.totalorder %s23, %s24
      %p38 = scmp.eq.s32.totalorder %s16, 1
      %p39 = por %p37, %p38
      %p41 = scmp.ne.s32.totalorder %s24, %s40
      %p42 = scmp.eq.s32.totalorder %s16, 0
      %p43 = por %p41, %p42
      %s44 = ssub.s32 %s10, %s17
      %p45 = scmp.eq.s32.totalorder %s44, 0
      %s47 = sadd.s32 %s46, 1
      %s48 = scalar_select %p45, %s46, %s47
      %p51 = pneg %p45
      %p52 = scmp.eq.s32.totalorder %s10, 1
      %p53 = por %p51, %p52
      %p54 = scmp.ne.s32.totalorder %s46, %s49
      %p55 = scmp.eq.s32.totalorder %s10, 0
      %p56 = por %p54, %p55
      %p57 = scmp.ne.s32.totalorder %s46, %s49
      %p58 = scmp.eq.s32.totalorder %s15, 1
      %p59 = por %p57, %p58
      %p60 = scmp.ne.s32.totalorder %s49, %s50
      %p61 = scmp.eq.s32.totalorder %s15, 0
      %p62 = por %p60, %p61
      %p63 = scmp.ne.s32.totalorder %s49, %s50
      %p64 = scmp.eq.s32.totalorder %s16, 1
      %p65 = por %p63, %p64
      %p67 = scmp.ne.s32.totalorder %s50, %s66
      %p68 = scmp.eq.s32.totalorder %s16, 0
      %p69 = por %p67, %p68
      %s70 = ssub.s32 %s10, %s17
      %p71 = scmp.eq.s32.totalorder %s70, 0
      %s73 = sadd.s32 %s72, 1
      %s74 = scalar_select %p71, %s72, %s73
      %p77 = pneg %p71
      %p78 = scmp.eq.s32.totalorder %s10, 1
      %p79 = por %p77, %p78
      %p80 = scmp.ne.s32.totalorder %s72, %s75
      %p81 = scmp.eq.s32.totalorder %s10, 0
      %p82 = por %p80, %p81
      %p83 = scmp.ne.s32.totalorder %s72, %s75
      %p84 = scmp.eq.s32.totalorder %s15, 1
      %p85 = por %p83, %p84
      %p86 = scmp.ne.s32.totalorder %s75, %s76
      %p87 = scmp.eq.s32.totalorder %s15, 0
      %p88 = por %p86, %p87
      %p89 = scmp.ne.s32.totalorder %s75, %s76
      %p90 = scmp.eq.s32.totalorder %s16, 1
      %p91 = por %p89, %p90
      %p93 = scmp.ne.s32.totalorder %s76, %s92
      %p94 = scmp.eq.s32.totalorder %s16, 0
      %p95 = por %p93, %p94
      %s97 = sadd.s32 %s96, 1
      %p100 = scmp.eq.s32.totalorder %s10, 1
      %p101 = scmp.ne.s32.totalorder %s96, %s98
      %p102 = scmp.eq.s32.totalorder %s10, 0
      %p103 = por %p101, %p102
      %p104 = scmp.ne.s32.totalorder %s96, %s98
      %p105 = scmp.eq.s32.totalorder %s15, 1
      %p106 = por %p104, %p105
      %p107 = scmp.ne.s32.totalorder %s98, %s99
      %p108 = scmp.eq.s32.totalorder %s15, 0
      %p109 = por %p107, %p108
      %p110 = scmp.ne.s32.totalorder %s98, %s99
      %p111 = scmp.eq.s32.totalorder %s16, 1
      %p112 = por %p110, %p111
      %p114 = scmp.ne.s32.totalorder %s99, %s113
      %p115 = scmp.eq.s32.totalorder %s16, 0
      %p116 = por %p114, %p115
      %p117 = scmp.le.s32.totalorder 1, %s10
      %p118 = scmp.lt.s32.totalorder %s10, 3
      %p119 = pnand %p117, %p118
      %p120 = pneg %p119
      // Predicated region
      $region9: #{tpu_custom_call.1} parent=5 // pred_check
        _
      $region10: #{tpu_custom_call.1} parent=5 // pred_check_branch
        %122 = sbr.rel (%p119) target = $region12
      $region11: #{tpu_custom_call.1} parent=5 // pred_region
        %s123 = ssub.s32 %s10, 1
      $region12: #{tpu_custom_call.1} parent=5 // pred_fallthru
        _
      %p124 = scmp.lt.s32.totalorder %s10, 2
      // Predicated region
      $region13: #{tpu_custom_call.1} parent=5 // pred_check
        %p125 = pneg %p124
      $region14: #{tpu_custom_call.1} parent=5 // pred_check_branch
        %127 = sbr.rel (%p125) target = $region16
      $region15: #{tpu_custom_call.1} parent=5 // pred_region
        // Predicated region
        $region17: #{tpu_custom_call.1} parent=15 // pred_check
          %p128 = pneg %p30
        $region18: #{tpu_custom_call.1} parent=15 // pred_check_branch
          %130 = sbr.rel (%p128) target = $region20
        $region19: #{tpu_custom_call.1} parent=15 // pred_region
          %p131 = scmp.lt.s32.totalorder %s10, 1
          %s132 = scalar_select %p131, %s10, 1
          %s133 = smul.addr %s132, 8
          %s134 = scalar_lea.vmem %s0, %s133
        $region20: #{tpu_custom_call.1} parent=15 // pred_fallthru
          _
        // Predicated region
        $region21: #{tpu_custom_call.1} parent=15 // pred_check
          %p135 = pneg %p56
        $region22: #{tpu_custom_call.1} parent=15 // pred_check_branch
          %137 = sbr.rel (%p135) target = $region24
        $region23: #{tpu_custom_call.1} parent=15 // pred_region
          %p138 = scmp.lt.s32.totalorder %s10, 1
          %s139 = scalar_select %p138, %s10, 1
          %s140 = smul.addr %s139, 8
          %s141 = scalar_lea.vmem %s1, %s140
        $region24: #{tpu_custom_call.1} parent=15 // pred_fallthru
          _
        // Predicated region
        $region25: #{tpu_custom_call.1} parent=15 // pred_check
          %p142 = pneg %p82
        $region26: #{tpu_custom_call.1} parent=15 // pred_check_branch
          %144 = sbr.rel (%p142) target = $region28
        $region27: #{tpu_custom_call.1} parent=15 // pred_region
          %s145 = smul.u32 8, %s10
          %p146 = scmp.lt.s32.totalorder %s145, 15
          %s147 = scalar_select %p146, %s145, 15
          %s148 = smul.addr %s147, 8
          %s149 = scalar_lea.vmem %s2, %s148
          %s150 = smul.u32 8, %s10
        $region28: #{tpu_custom_call.1} parent=15 // pred_fallthru
          _
      $region16: #{tpu_custom_call.1} parent=5 // pred_fallthru
        _
      %p151 = scmp.le.s32.totalorder 1, %s10
      %p152 = scmp.lt.s32.totalorder %s10, 3
      %p153 = pnand %p151, %p152
      %p154 = pneg %p153
      // Predicated region
      $region29: #{tpu_custom_call.1} parent=5 // pred_check
        _
      $region30: #{tpu_custom_call.1} parent=5 // pred_check_branch
        %156 = sbr.rel (%p153) target = $region32
      $region31: #{tpu_custom_call.1} parent=5 // pred_region
        %s157 = ssub.s32 %s10, 1
        %p158 = scmp.lt.s32.totalorder %s15, 1
        %s159 = scalar_select %p158, %s15, 1
        %s160 = smul.addr %s159, 8
        %s161 = scalar_lea.vmem %s0, %s160
        %p162 = pneg %p36
        %p163 = pneg %p33
        %p164 = scmp.lt.s32.totalorder %s15, 1
        %s165 = scalar_select %p164, %s15, 1
        %s166 = smul.addr %s165, 8
        %s167 = scalar_lea.vmem %s1, %s166
        %p168 = pneg %p62
        %p169 = pneg %p59
        %s170 = smul.u32 8, %s15
        %p171 = scmp.lt.s32.totalorder %s170, 15
        %s172 = scalar_select %p171, %s170, 15
        %s173 = smul.addr %s172, 8
        %s174 = scalar_lea.vmem %s2, %s173
        %p175 = pneg %p88
        %p176 = pneg %p85
        %p177 = pneg %p109
        %p178 = pneg %p106
        %p179 = scmp.lt.s32.totalorder %s15, 1
        %s180 = scalar_select %p179, %s15, 1
        %s181 = smul.addr %s180, 8
        %s182 = scalar_lea.vmem %s0, %s181
        %p183 = scmp.lt.s32.totalorder %s15, 1
        %s184 = scalar_select %p183, %s15, 1
        %s185 = smul.addr %s184, 8
        %s186 = scalar_lea.vmem %s1, %s185
        %s187 = smul.u32 8, %s15
        %p188 = scmp.lt.s32.totalorder %s187, 15
        %s189 = scalar_select %p188, %s187, 15
        %s190 = smul.addr %s189, 8
        %s191 = scalar_lea.vmem %s2, %s190
        %s192 = smul.u32 8, %s15
        %p193 = scmp.eq.s32.totalorder %s15, 0
        // Predicated region
        $region33: #{tpu_custom_call.1} parent=31 // pred_check
          %p194 = pneg %p193
        $region34: #{tpu_custom_call.1} parent=31 // pred_check_branch
          %196 = sbr.rel (%p194) target = $region36
        $region35: #{tpu_custom_call.1} parent=31 // pred_region
          %vm197 = vcmask 0
          %198 = vst.msk [vmem:[#allocation2] sm:$0x1] %vm197, 0.0
        $region36: #{tpu_custom_call.1} parent=31 // pred_fallthru
          _
        %v199 = vld [vmem:[%s182] sm:$0xff]
        %v200 = vld [vmem:[%s186] sm:$0xff]
        %v201 = vld [vmem:[%s191] sm:$0x1f]
        %v202 = vld [vmem:[%s191 + $0x8] sm:$0x1f]
        %v203 = vld [vmem:[%s191 + $0x10] sm:$0x1f]
        %v204 = vld [vmem:[%s191 + $0x18] sm:$0x1f]
        %v205 = vld [vmem:[%s191 + $0x20] sm:$0x1f]
        %v206 = vld [vmem:[%s191 + $0x28] sm:$0x1f]
        %v207 = vld [vmem:[%s191 + $0x30] sm:$0x1f]
        %v208 = vld [vmem:[%s191 + $0x38] sm:$0x1f]
        %v209 = vmul.f32 %v200, %v199
        %210 = vadd.xlane.f32.xlu0 %v209
        %v211 = vpop.xlane.xlu0 %210
        %v212 = vmin.f32 %v211, 0.0
        %v213 = vand.u32 2147483647, %v211
        %v214 = vsub.f32 0.0, %v213
        %v215 = vmul.f32 %v214, 1.442695
        %v216 = vpow.pop %v215
        %v217 = vadd.f32 %v216, 1.0
        %v218 = vlog2.pop %v217
        %v219 = vmul.f32 %v218, 0.6931472
        %v220 = vsub.f32 %v212, %v219
        %v222 = vrot.slane %v199, 1
        %v223 = vrot.slane %v199, 2
        %v224 = vrot.slane %v199, 3
        %v225 = vrot.slane %v199, 4
        %v226 = vrot.slane %v199, 5
        %v227 = vrot.slane %v199, 6
        %v228 = vrot.slane %v199, 7
        %v229 = vperm.slane %v199, 0
        %v230 = vperm.slane %v222, 0
        %v231 = vperm.slane %v223, 0
        %v232 = vperm.slane %v224, 0
        %v233 = vperm.slane %v225, 0
        %v234 = vperm.slane %v226, 0
        %v235 = vperm.slane %v227, 0
        %v236 = vperm.slane %v228, 0
        %v245 = vmul.f32 %v201, %v229
        %v246 = vmul.f32 %v202, %v230
        %v247 = vmul.f32 %v203, %v231
        %v248 = vmul.f32 %v204, %v232
        %v249 = vmul.f32 %v205, %v233
        %v250 = vmul.f32 %v206, %v234
        %v251 = vmul.f32 %v207, %v235
        %v252 = vmul.f32 %v208, %v236
        %vm253 = vcmask 1044480
        %v254 = vsel %vm253, %v245, 0.0
        %255 = vadd.xlane.f32.xlu0 %v254
        %v256 = vpop.xlane.xlu0 %255
        %v257 = vsel %vm253, %v246, 0.0
        %258 = vadd.xlane.f32.xlu0 %v257
        %v259 = vpop.xlane.xlu0 %258
        %v260 = vsel %vm253, %v247, 0.0
        %261 = vadd.xlane.f32.xlu0 %v260
        %v262 = vpop.xlane.xlu0 %261
        %v263 = vsel %vm253, %v248, 0.0
        %264 = vadd.xlane.f32.xlu0 %v263
        %v265 = vpop.xlane.xlu0 %264
        %v266 = vsel %vm253, %v249, 0.0
        %267 = vadd.xlane.f32.xlu0 %v266
        %v268 = vpop.xlane.xlu0 %267
        %v269 = vsel %vm253, %v250, 0.0
        %270 = vadd.xlane.f32.xlu0 %v269
        %v271 = vpop.xlane.xlu0 %270
        %v272 = vsel %vm253, %v251, 0.0
        %273 = vadd.xlane.f32.xlu0 %v272
        %v274 = vpop.xlane.xlu0 %273
        %v275 = vsel %vm253, %v252, 0.0
        %276 = vadd.xlane.f32.xlu0 %v275
        %v277 = vpop.xlane.xlu0 %276
        %v278 = vsub.f32 0.0, %v256
        %v279 = vsub.f32 0.0, %v259
        %v280 = vsub.f32 0.0, %v262
        %v281 = vsub.f32 0.0, %v265
        %v282 = vsub.f32 0.0, %v268
        %v283 = vsub.f32 0.0, %v271
        %v284 = vsub.f32 0.0, %v274
        %v285 = vsub.f32 0.0, %v277
        %v286 = vmin.f32 %v278, 0.0
        %v287 = vmin.f32 %v279, 0.0
        %v288 = vmin.f32 %v280, 0.0
        %v289 = vmin.f32 %v281, 0.0
        %v290 = vmin.f32 %v282, 0.0
        %v291 = vmin.f32 %v283, 0.0
        %v292 = vmin.f32 %v284, 0.0
        %v293 = vmin.f32 %v285, 0.0
        %v294 = vand.u32 2147483647, %v278
        %v295 = vand.u32 2147483647, %v279
        %v296 = vand.u32 2147483647, %v280
        %v297 = vand.u32 2147483647, %v281
        %v298 = vand.u32 2147483647, %v282
        %v299 = vand.u32 2147483647, %v283
        %v300 = vand.u32 2147483647, %v284
        %v301 = vand.u32 2147483647, %v285
        %v302 = vsub.f32 0.0, %v294
        %v303 = vsub.f32 0.0, %v295
        %v304 = vsub.f32 0.0, %v296
        %v305 = vsub.f32 0.0, %v297
        %v306 = vsub.f32 0.0, %v298
        %v307 = vsub.f32 0.0, %v299
        %v308 = vsub.f32 0.0, %v300
        %v309 = vsub.f32 0.0, %v301
        %v310 = vmul.f32 %v302, 1.442695
        %v311 = vpow.pop %v310
        %v312 = vmul.f32 %v303, 1.442695
        %v313 = vpow.pop %v312
        %v314 = vmul.f32 %v304, 1.442695
        %v315 = vpow.pop %v314
        %v316 = vmul.f32 %v305, 1.442695
        %v317 = vpow.pop %v316
        %v318 = vmul.f32 %v306, 1.442695
        %v319 = vpow.pop %v318
        %v320 = vmul.f32 %v307, 1.442695
        %v321 = vpow.pop %v320
        %v322 = vmul.f32 %v308, 1.442695
        %v323 = vpow.pop %v322
        %v324 = vmul.f32 %v309, 1.442695
        %v325 = vpow.pop %v324
        %v326 = vadd.f32 %v311, 1.0
        %v327 = vadd.f32 %v313, 1.0
        %v328 = vadd.f32 %v315, 1.0
        %v329 = vadd.f32 %v317, 1.0
        %v330 = vadd.f32 %v319, 1.0
        %v331 = vadd.f32 %v321, 1.0
        %v332 = vadd.f32 %v323, 1.0
        %v333 = vadd.f32 %v325, 1.0
        %v334 = vlog2.pop %v326
        %v335 = vmul.f32 %v334, 0.6931472
        %v336 = vlog2.pop %v327
        %v337 = vmul.f32 %v336, 0.6931472
        %v338 = vlog2.pop %v328
        %v339 = vmul.f32 %v338, 0.6931472
        %v340 = vlog2.pop %v329
        %v341 = vmul.f32 %v340, 0.6931472
        %v342 = vlog2.pop %v330
        %v343 = vmul.f32 %v342, 0.6931472
        %v344 = vlog2.pop %v331
        %v345 = vmul.f32 %v344, 0.6931472
        %v346 = vlog2.pop %v332
        %v347 = vmul.f32 %v346, 0.6931472
        %v348 = vlog2.pop %v333
        %v349 = vmul.f32 %v348, 0.6931472
        %v350 = vsub.f32 %v286, %v335
        %v351 = vsub.f32 %v287, %v337
        %v352 = vsub.f32 %v288, %v339
        %v353 = vsub.f32 %v289, %v341
        %v354 = vsub.f32 %v290, %v343
        %v355 = vsub.f32 %v291, %v345
        %v356 = vsub.f32 %v292, %v347
        %v357 = vsub.f32 %v293, %v349
        %v366 = vlaneseq
        %v367 = vand.u32 %v366, 127
        %v368 = vperm.slane %v350, %v367
        %v369 = vperm.slane %v351, %v367
        %v370 = vperm.slane %v352, %v367
        %v371 = vperm.slane %v353, %v367
        %v372 = vperm.slane %v354, %v367
        %v373 = vperm.slane %v355, %v367
        %v374 = vperm.slane %v356, %v367
        %v375 = vperm.slane %v357, %v367
        %vm376 = vcmask 1041409
        %v377 = vsel %vm376, %v369, %v368
        %vm378 = vcmask 1042434
        %v379 = vsel %vm378, %v370, %v377
        %vm380 = vcmask 1043459
        %v381 = vsel %vm380, %v371, %v379
        %vm382 = vcmask 1044484
        %v383 = vsel %vm382, %v372, %v381
        %vm384 = vcmask 1045509
        %v385 = vsel %vm384, %v373, %v383
        %vm386 = vcmask 1046534
        %v387 = vsel %vm386, %v374, %v385
        %vm388 = vcmask 1047559
        %v389 = vsel %vm388, %v375, %v387
        %vm391 = vcmask 39936
        %v392 = vsel %vm391, %v389, 0.0
        %393 = vadd.xlane.f32.xlu0 %v392
        %v394 = vpop.xlane.xlu0 %393
        %s395 = smul.u32 %s15, 8
        %v396 = vlaneseq
        %v397 = vshrl.u32 %v396, 7
        %v398 = vstv %s395
        %v399 = vadd.s32 %v398, %v397
        %vm400 = vcmp.lt.s32.totalorder %v399, 12
        %v401 = vsel %vm400, 1, 0
        %v402 = vcvt.s32.f32 %v401
        %v403 = vld [vmem:[#allocation2] sm:$0x1]
        %v404 = vadd.f32 %v220, %v394
        %v405 = vmul.f32 %v402, %v404
        %vm406 = vcmask 7168
        %v407 = vsel %vm406, %v405, 0.0
        %408 = vadd.xlane.f32.xlu0 %v407
        %v409 = vpop.xlane.xlu0 %408
        %v410 = vrot.slane %v409, 4
        %v411 = vadd.f32 %v409, %v410
        %v412 = vrot.slane %v411, 2
        %v413 = vadd.f32 %v411, %v412
        %v414 = vrot.slane %v413, 1
        %v415 = vadd.f32 %v413, %v414
        %s416 = vtos %v415
        %v417 = vstv %s416
        %v418 = vadd.f32 %v403, %v417
        %vm419 = vcmask 0
        %420 = vst.msk [vmem:[#allocation2] sm:$0x1] %vm419, %v418
        %p421 = scmp.eq.s32.totalorder %s15, 1
        // Predicated region
        $region37: #{tpu_custom_call.1} parent=31 // pred_check
          %p422 = pneg %p421
        $region38: #{tpu_custom_call.1} parent=31 // pred_check_branch
          %424 = sbr.rel (%p422) target = $region40
        $region39: #{tpu_custom_call.1} parent=31 // pred_region
          %v425 = vld [vmem:[#allocation2] sm:$0x1]
          %v426 = vsub.f32 0.0, %v425
          %v427 = vrcp.pop 12.0
          %v428 = vmul.f32 12.0, %v427
          %v429 = vsub.f32 1.0, %v428
          %v430 = vmul.f32 %v427, %v429
          %v431 = vadd.f32 %v427, %v430
          %vm432 = vweird.f32 %v427
          %v433 = vsel %vm432, %v427, %v431
          %v434 = vmul.f32 %v426, %v433
          %435 = vst.msk [vmem:[#allocation3] sm:$0x1] %vm419, %v434
        $region40: #{tpu_custom_call.1} parent=31 // pred_fallthru
          _
        // Predicated region
        $region41: #{tpu_custom_call.1} parent=31 // pred_check
          %p436 = pneg %p106
        $region42: #{tpu_custom_call.1} parent=31 // pred_check_branch
          %438 = sbr.rel (%p436) target = $region44
        $region43: #{tpu_custom_call.1} parent=31 // pred_region
          %440 = vsyncadd [#allocation4], 0
          %s442 = sshll.u32 [#allocation3], 4
          %s443 = int_to_ptr.vmem [resolvable:$true] %s442
          %s444 = sshll.u32 %s3, 4
          %s445 = int_to_ptr.hbm [resolvable:$true] %s444
          %447 = dma.vmem_to_hbm [thread:$0]  %s443, 16, %s445, [#allocation4]
        $region44: #{tpu_custom_call.1} parent=31 // pred_fallthru
          _
        // Predicated region
        $region45: #{tpu_custom_call.1} parent=31 // pred_check
          %p448 = pneg %p106
        $region46: #{tpu_custom_call.1} parent=31 // pred_check_branch
          %450 = sbr.rel (%p448) target = $region48
        $region47: #{tpu_custom_call.1} parent=31 // pred_region
          %452 = dma.done [#allocation4], 16
        $region48: #{tpu_custom_call.1} parent=31 // pred_fallthru
          _
      $region32: #{tpu_custom_call.1} parent=5 // pred_fallthru
        _
      %p453 = scmp.le.s32.totalorder 2, %s10
      // Predicated region
      $region49: #{tpu_custom_call.1} parent=5 // pred_check
        %p454 = pneg %p453
      $region50: #{tpu_custom_call.1} parent=5 // pred_check_branch
        %456 = sbr.rel (%p454) target = $region52
      $region51: #{tpu_custom_call.1} parent=5 // pred_region
        %s457 = ssub.s32 %s10, 2
      $region52: #{tpu_custom_call.1} parent=5 // pred_fallthru
        _
    $region6: #{tpu_custom_call.1} parent=1 // loop_footer
      %s14 = sadd.s32 1, %s10
    $region7: #{tpu_custom_call.1} parent=1 // loop_footer_branch
      %9 = sbr.rel target = $region3
    $region8: #{tpu_custom_call.1} parent=1 // loop_exit
      _
    %458 = vsyncpa [#allocation4], 1
    %s459 = scalar_lea.sflag [#allocation4], 1
    %460 = vsyncpa %s459, 1

</llo_original>
